<compile_context>
chip_gen: v7x
topology: tpu7x:2x2x1
jax: 0.10.0
libtpu: 0.0.40
codegen_flags: <defaults>
</compile_context>

<pallas_src>
import jax
import jax.numpy as jnp
import numpy as np
from jax.experimental import pallas as pl
from jax.experimental.pallas import tpu as pltpu


def build_msd_matrix(ms, ks, bs):
    """Replicates MultiMSD.__init__ exactly (row construction order included)."""
    assert len(ms) == len(ks) == len(bs) and len(ms) > 1
    n = len(ms)
    rows = []
    for i in range(n):
        x_1 = np.zeros(n * 2, dtype=np.float32)
        x_2 = np.zeros(n * 2, dtype=np.float32)
        x_1[i * 2 + 1] = 1.0
        if i > 0:
            x_2[i * 2 - 2] = ks[i] / ms[i]
            x_2[i * 2 - 1] = bs[i] / ms[i]
        x_2[i * 2] = -(ks[i] + (ks[i + 1] if i + 1 < n else 0.0)) / ms[i]
        x_2[i * 2 + 1] = -(bs[i] + (bs[i + 1] if i + 1 < n else 0.0)) / ms[i]
        if i + 1 < n:
            x_2[i * 2 + 2] = ks[i + 1] / ms[i]
            x_2[i * 2 + 3] = bs[i + 1] / ms[i]
        rows.append(x_1)
        rows.append(x_2)
    return jnp.asarray(np.stack(rows))  # (2n, 2n)


def _round_up(x, m):
    return ((x + m - 1) // m) * m


def _msd_kernel(x_ref, w_ref, o_ref):
    # (TB, LANE) @ (LANE, LANE) on the MXU.  W = kron(I_P, A^T) is
    # block-diagonal, so each packed 128-wide row is P independent x @ A^T
    # products; rows never mix, which also makes partial boundary blocks safe.
    o_ref[...] = jnp.dot(
        x_ref[...], w_ref[...], preferred_element_type=jnp.float32
    ).astype(o_ref.dtype)


def _packed_call(xp, w, tb):
    """Run the packed matmul. xp: (r, lane), w: (lane, lane) -> (r, lane)."""
    r, lane = xp.shape
    itemsize = xp.dtype.itemsize
    tb = max(8, (int(tb) // 8) * 8)  # keep the tile sublane-aligned

    if r <= 8:
        tb_eff = r  # single full-extent block (equals array dim -> allowed)
    else:
        # At least 2 grid steps when possible (v7x megacore sharding), tile a
        # multiple of 8 sublanes.  The last block may be partial: Pallas masks
        # the boundary DMA/writeback and rows are independent, so it's safe.
        half = _round_up(pl.cdiv(r, 2), 8)
        tb_eff = max(8, min(tb, half))
        # Cap the tile so double-buffered x+y streams fit a conservative VMEM
        # budget on every generation (v7x physical VMEM is only 64 MiB).
        budget = 44 << 20
        max_tb = max(8, (budget // (2 * 2 * lane * itemsize)) // 8 * 8)
        tb_eff = min(tb_eff, max_tb)

    grid = (pl.cdiv(r, tb_eff),)

    # Explicit scoped-VMEM request: 2x double-buffered (tb, lane) x/y tiles,
    # 2 buffers of the (lane, lane) weight, plus headroom.
    vmem_bytes = int(
        2 * 2 * tb_eff * lane * itemsize
        + 2 * lane * lane * itemsize
        + (4 << 20)
    )

    cost = pl.CostEstimate(
        flops=2 * r * lane * lane,
        transcendentals=0,
        bytes_accessed=(2 * r * lane + lane * lane) * itemsize,
    )

    return pl.pallas_call(
        _msd_kernel,
        out_shape=jax.ShapeDtypeStruct((r, lane), xp.dtype),
        grid=grid,
        in_specs=[
            pl.BlockSpec((tb_eff, lane), lambda i: (i, 0)),  # streamed batch tiles
            pl.BlockSpec((lane, lane), lambda i: (0, 0)),    # resident weight
        ],
        out_specs=pl.BlockSpec((tb_eff, lane), lambda i: (i, 0)),
        compiler_params=pltpu.CompilerParams(
            dimension_semantics=("parallel",),
            vmem_limit_bytes=vmem_bytes,
        ),
        cost_estimate=cost,
    )(xp, w)


def multi_msd_forward(x, matrix, *, tb=8192):
    """Pallas equivalent of MultiMSD.forward(_, x) = x @ matrix.T."""
    B, D = x.shape
    assert matrix.shape == (D, D)

    # Lane packing: pad the state dim up to a divisor of 128 (power of two) so
    # the packed lane width is a multiple of 128 -> dense, unmasked stores.
    if D <= 128:
        d_eff = max(1, int(pl.next_power_of_2(D)))
        P = 128 // d_eff
    else:
        d_eff = _round_up(D, 128)
        P = 1
    lane = P * d_eff

    xw, m = x, matrix
    if d_eff != D:
        # Column zero-padding (one copy of x) keeps the lane-dense fast path
        # for state dims that don't divide 128.
        xw = jnp.pad(x, ((0, 0), (0, d_eff - D)))
        m = jnp.pad(matrix, ((0, d_eff - D), (0, d_eff - D)))

    # Block-diagonal weight (lane, lane): DMA'd once (constant index_map).
    w = jnp.kron(jnp.eye(P, dtype=m.dtype), m.T).astype(x.dtype)

    tail = B % P
    b_main = B - tail
    outs = []

    if b_main > 0:
        # Zero-copy packed view when B % P == 0; otherwise only the aligned
        # prefix is materialized (no full-array zero-padding pass).
        xm = xw if tail == 0 else xw[:b_main]
        xm = xm.reshape(b_main // P, lane)
        ym = _packed_call(xm, w, tb)
        outs.append(ym.reshape(b_main, d_eff)[:, :D])

    if tail > 0:
        # Ragged tail (< P rows): tiny padded single-block call (<= 4 KiB).
        xt = jnp.pad(xw[b_main:], ((0, 8 * P - tail), (0, 0))).reshape(8, lane)
        yt = _packed_call(xt, w, tb)
        outs.append(yt.reshape(8 * P, d_eff)[:tail, :D])

    return outs[0] if len(outs) == 1 else jnp.concatenate(outs, axis=0)


if __name__ == "__main__":
    # Deterministic "parameters": 4 masses -> state dim 8.
    ms = [1.0, 2.0, 1.5, 0.5]
    ks = [3.0, 1.0, 2.0, 4.0]
    bs = [0.5, 0.2, 0.3, 0.1]
    matrix = build_msd_matrix(ms, ks, bs)  # (8, 8)
    state_dim = 2 * len(ms)

    key = jax.random.PRNGKey(0)
    k1, k2 = jax.random.split(key)

    # Ragged batch: exercises the aligned-prefix path + tiny tail call.
    x1 = jax.random.normal(k1, (37, state_dim), dtype=jnp.float32)
    y1 = jax.block_until_ready(multi_msd_forward(x1, matrix))
    np.testing.assert_allclose(
        np.asarray(y1), np.asarray(x1 @ matrix.T), rtol=1e-5, atol=1e-5
    )

    # Pack-aligned batch: fully zero-copy view, multi-step grid with a partial
    # last block (exercises the boundary-masking path).
    x2 = jax.random.normal(k2, (1008, state_dim), dtype=jnp.float32)
    y2 = jax.block_until_ready(multi_msd_forward(x2, matrix))
    np.testing.assert_allclose(
        np.asarray(y2), np.asarray(x2 @ matrix.T), rtol=1e-5, atol=1e-5
    )

    print("KERNEL_OK")
</pallas_src>

<mosaic_0001>
module attributes {stable_mosaic.version = 11 : i64} {
  func.func @_msd_kernel(%arg0: i32, %arg1: memref<2x128xf32, #tpu.memory_space<vmem>>, %arg2: memref<128x128xf32, #tpu.memory_space<vmem>>, %arg3: memref<2x128xf32, #tpu.memory_space<vmem>>) attributes {dimension_semantics = [#tpu.dimension_semantics<parallel>], iteration_bounds = array<i64: 1>, scalar_prefetch = 0 : i64, scratch_operands = 0 : i64, tpu.core_type = #tpu.core_type<tc>, window_params = [{transform_indices = @transform_0, window_bounds = array<i64: 2, 128>}, {pipeline_mode = #tpu.pipeline_mode<synchronous>, transform_indices = @transform_1, window_bounds = array<i64: 128, 128>}, {transform_indices = @transform_2, window_bounds = array<i64: 2, 128>}]} {
    %c0 = arith.constant 0 : index
    %c0_0 = arith.constant 0 : index
    %0 = vector.load %arg1[%c0, %c0_0] : memref<2x128xf32, #tpu.memory_space<vmem>>, vector<2x128xf32>
    %c0_1 = arith.constant 0 : index
    %c0_2 = arith.constant 0 : index
    %1 = vector.load %arg2[%c0_1, %c0_2] : memref<128x128xf32, #tpu.memory_space<vmem>>, vector<128x128xf32>
    %cst = arith.constant dense<0.000000e+00> : vector<2x128xf32>
    %2 = tpu.matmul %0, %1, %cst {dimension_numbers = #tpu.dot_dimension_numbers<[1], [0], [0], [1], [0, 0, 1, 1], [], []>} : vector<2x128xf32>, vector<128x128xf32>, vector<2x128xf32> -> vector<2x128xf32>
    %c0_3 = arith.constant 0 : index
    %c0_4 = arith.constant 0 : index
    %3 = vector.load %arg3[%c0_3, %c0_4] : memref<2x128xf32, #tpu.memory_space<vmem>>, vector<2x128xf32>
    tpu.vector_store %arg3[%c0_3, %c0_4], %2 {strides = array<i32>} : memref<2x128xf32, #tpu.memory_space<vmem>>, vector<2x128xf32>,
    return
  }
  func.func @transform_0(%arg0: i32) -> (i32, i32) {
    %c0_i32 = arith.constant 0 : i32
    %c0_i32_0 = arith.constant 0 : i32
    return %arg0, %c0_i32 : i32, i32
  }
  func.func @transform_1(%arg0: i32) -> (i32, i32) {
    %c0_i32 = arith.constant 0 : i32
    %c0_i32_0 = arith.constant 0 : i32
    %c0_i32_1 = arith.constant 0 : i32
    return %c0_i32, %c0_i32_0 : i32, i32
  }
  func.func @transform_2(%arg0: i32) -> (i32, i32) {
    %c0_i32 = arith.constant 0 : i32
    %c0_i32_0 = arith.constant 0 : i32
    return %arg0, %c0_i32 : i32, i32
  }
}

</mosaic_0001>

<llo_original>
// kernel: tpu_custom_call.1
$region0: #{tpu_custom_call.1}
  #allocation0 [shape = 'u32[]', space=smem, size = 0x4, offset = 0x4, fixed_abs, tag = 'smem constant byte address 0x4 - core index']
  #allocation1 [shape = 'u32[144,128]{1,0:T(1,128)}', space=vmem, size = 0x12000, scoped, tag = 'internal scratch']
  %s0 = inlined_call_operand.hbm [shape: f32[2,128], index: 0, kind: input, shape index: {}]
  %s1 = inlined_call_operand.hbm [shape: f32[128,128], index: 1, kind: input, shape index: {}]
  %s2 = inlined_call_operand.hbm [shape: f32[2,128], index: 2, kind: output, shape index: {}]
  %s3 = sld [smem:[#allocation0]]
  $region26: #{tpu_custom_call.1} parent=0
    _
  %s5 = ssub.s32 1, %s3
  %s6 = scalar_select 0, %s5, %s3
  $region1: #{tpu_custom_call.1} parent=0
    #allocation2 [shape = 'u8[1024]{0}', space=vmem, size = 0x400, scoped, tag = 'input window, operand 0, single buffered']
    #allocation3 [shape = 's32[1]{0}', space=sflag, size = 0x4, scoped, tag = 'scoped memory for tpu_custom_call.1']
    #allocation4 [shape = 's32[1]{0}', space=sflag, size = 0x4, scoped, tag = 'scoped memory for tpu_custom_call.1']
    #allocation5 [shape = 'u8[65536]{0}', space=vmem, size = 0x10000, scoped, tag = 'input window, operand 1, single buffered']
    #allocation6 [shape = 's32[1]{0}', space=sflag, size = 0x4, scoped, tag = 'scoped memory for tpu_custom_call.1']
    #allocation7 [shape = 'u8[1024]{0}', space=vmem, size = 0x400, scoped, tag = 'output window, operand 0, single buffered']
    %7 = vsyncpa [#allocation3], 0
    %8 = vsyncpa [#allocation6], 0
    %9 = vsyncpa [#allocation4], 0
    // Predicated region
    $region2: #{tpu_custom_call.1} parent=1 // pred_check
      _
    $region3: #{tpu_custom_call.1} parent=1 // pred_check_branch
      %11 = sbr.rel (0) target = $region5
    $region4: #{tpu_custom_call.1} parent=1 // pred_region
      %s13 = ssub.s32 32, 32
      %14 = vsyncadd [#allocation3], %s13
      %s16 = sshll.u32 [#allocation2], 4
      %s17 = int_to_ptr.vmem [resolvable:$true] %s16
      %19 = dma.hbm_to_vmem [thread:$0]  %s0, 32, %s17, [#allocation3]
    $region5: #{tpu_custom_call.1} parent=1 // pred_fallthru
      _
    // Predicated region
    $region6: #{tpu_custom_call.1} parent=1 // pred_check
      _
    $region7: #{tpu_custom_call.1} parent=1 // pred_check_branch
      %21 = sbr.rel (0) target = $region9
    $region8: #{tpu_custom_call.1} parent=1 // pred_region
      %s23 = ssub.s32 2048, 2048
      %24 = vsyncadd [#allocation6], %s23
      %s25 = sshll.u32 [#allocation5], 4
      %s26 = int_to_ptr.vmem [resolvable:$true] %s25
      %31 = dma.hbm_to_vmem [thread:$0]  %s1, 2048, %s26, [#allocation6], 128, 128, 8
    $region9: #{tpu_custom_call.1} parent=1 // pred_fallthru
      _
    // Predicated region
    $region10: #{tpu_custom_call.1} parent=1 // pred_check
      _
    $region11: #{tpu_custom_call.1} parent=1 // pred_check_branch
      %33 = sbr.rel (0) target = $region13
    $region12: #{tpu_custom_call.1} parent=1 // pred_region
      %34 = dma.done [#allocation3], 32
    $region13: #{tpu_custom_call.1} parent=1 // pred_fallthru
      _
    // Predicated region
    $region14: #{tpu_custom_call.1} parent=1 // pred_check
      _
    $region15: #{tpu_custom_call.1} parent=1 // pred_check_branch
      %36 = sbr.rel (0) target = $region17
    $region16: #{tpu_custom_call.1} parent=1 // pred_region
      %37 = dma.done [#allocation6], 2048
    $region17: #{tpu_custom_call.1} parent=1 // pred_fallthru
      _
    %v38 = vld [vmem:[#allocation2] sm:$0x3]
    %v39 = vld [vmem:[#allocation5] sm:$0xff]
    %v40 = vld [vmem:[#allocation5 + $0x8] sm:$0xff]
    %v41 = vld [vmem:[#allocation5 + $0x10] sm:$0xff]
    %v42 = vld [vmem:[#allocation5 + $0x18] sm:$0xff]
    %v43 = vld [vmem:[#allocation5 + $0x20] sm:$0xff]
    %v44 = vld [vmem:[#allocation5 + $0x28] sm:$0xff]
    %v45 = vld [vmem:[#allocation5 + $0x30] sm:$0xff]
    %v46 = vld [vmem:[#allocation5 + $0x38] sm:$0xff]
    %v47 = vld [vmem:[#allocation5 + $0x40] sm:$0xff]
    %v48 = vld [vmem:[#allocation5 + $0x48] sm:$0xff]
    %v49 = vld [vmem:[#allocation5 + $0x50] sm:$0xff]
    %v50 = vld [vmem:[#allocation5 + $0x58] sm:$0xff]
    %v51 = vld [vmem:[#allocation5 + $0x60] sm:$0xff]
    %v52 = vld [vmem:[#allocation5 + $0x68] sm:$0xff]
    %v53 = vld [vmem:[#allocation5 + $0x70] sm:$0xff]
    %v54 = vld [vmem:[#allocation5 + $0x78] sm:$0xff]
    %55 = vmatprep.subr.mxu0 0.0
    %56 = vmatpush1.msra.mxu0 %v39
    %57 = vmatprep.subr.mxu0 0.0
    %58 = vmatpush1.msra.mxu0 %v40
    %59 = vmatprep.subr.mxu0 0.0
    %60 = vmatpush1.msra.mxu0 %v41
    %61 = vmatprep.subr.mxu0 0.0
    %62 = vmatpush1.msra.mxu0 %v42
    %63 = vmatprep.subr.mxu0 0.0
    %64 = vmatpush1.msra.mxu0 %v43
    %65 = vmatprep.subr.mxu0 0.0
    %66 = vmatpush1.msra.mxu0 %v44
    %67 = vmatprep.subr.mxu0 0.0
    %68 = vmatpush1.msra.mxu0 %v45
    %69 = vmatprep.subr.mxu0 0.0
    %70 = vmatpush1.msra.mxu0 %v46
    %71 = vmatprep.subr.mxu0 0.0
    %72 = vmatpush1.msra.mxu0 %v47
    %73 = vmatprep.subr.mxu0 0.0
    %74 = vmatpush1.msra.mxu0 %v48
    %75 = vmatprep.subr.mxu0 0.0
    %76 = vmatpush1.msra.mxu0 %v49
    %77 = vmatprep.subr.mxu0 0.0
    %78 = vmatpush1.msra.mxu0 %v50
    %79 = vmatprep.subr.mxu0 0.0
    %80 = vmatpush1.msra.mxu0 %v51
    %81 = vmatprep.subr.mxu0 0.0
    %82 = vmatpush1.msra.mxu0 %v52
    %83 = vmatprep.subr.mxu0 0.0
    %84 = vmatpush1.msra.mxu0 %v53
    %85 = vmatprep.subr.mxu0 0.0
    %86 = vmatpush1.msra.mxu0 %v54
    %87 = vmatprep.subr.mxu0 0.0
    %88 = vmatpush1.msra.mxu0 0.0
    %89 = vmatprep.subr.mxu0 0.0
    %90 = vmatpush1.msra.mxu0 0.0
    %91 = vmatprep.subr.mxu0 0.0
    %92 = vmatpush1.msra.mxu0 0.0
    %93 = vmatprep.subr.mxu0 0.0
    %94 = vmatpush1.msra.mxu0 0.0
    %95 = vmatprep.subr.mxu0 0.0
    %96 = vmatpush1.msra.mxu0 0.0
    %97 = vmatprep.subr.mxu0 0.0
    %98 = vmatpush1.msra.mxu0 0.0
    %99 = vmatprep.subr.mxu0 0.0
    %100 = vmatpush1.msra.mxu0 0.0
    %101 = vmatprep.subr.mxu0 0.0
    %102 = vmatpush1.msra.mxu0 0.0
    %103 = vmatprep.subr.mxu0 0.0
    %104 = vmatpush1.msra.mxu0 0.0
    %105 = vmatprep.subr.mxu0 0.0
    %106 = vmatpush1.msra.mxu0 0.0
    %107 = vmatprep.subr.mxu0 0.0
    %108 = vmatpush1.msra.mxu0 0.0
    %109 = vmatprep.subr.mxu0 0.0
    %110 = vmatpush1.msra.mxu0 0.0
    %111 = vmatprep.subr.mxu0 0.0
    %112 = vmatpush1.msra.mxu0 0.0
    %113 = vmatprep.subr.mxu0 0.0
    %114 = vmatpush1.msra.mxu0 0.0
    %115 = vmatprep.subr.mxu0 0.0
    %116 = vmatpush1.msra.mxu0 0.0
    %117 = vmatprep.subr.mxu0 0.0
    %118 = vmatpush1.msra.mxu0 0.0
    %119 = vmatprep.mubr.f32.mxu0 0.0
    %120 = vmatmul.mubr.f32.gmra.mrb[0].mxu0 %v38
    %v121 = vpop.f32.mrb[0].mxu0
    %v122 = vadd.f32 0.0, %v121
    %v123 = vpop.f32.mrb[0].mxu0
    %124 = vdwg.mxu0
    %125 = vst [vmem:[#allocation7] sm:$0x3] %v122
    // Predicated region
    $region18: #{tpu_custom_call.1} parent=1 // pred_check
      _
    $region19: #{tpu_custom_call.1} parent=1 // pred_check_branch
      %127 = sbr.rel (0) target = $region21
    $region20: #{tpu_custom_call.1} parent=1 // pred_region
      %s129 = ssub.s32 32, 32
      %130 = vsyncadd [#allocation4], %s129
      %s132 = sshll.u32 [#allocation7], 4
      %s133 = int_to_ptr.vmem [resolvable:$true] %s132
      %135 = dma.vmem_to_hbm [thread:$0]  %s133, 32, %s2, [#allocation4]
    $region21: #{tpu_custom_call.1} parent=1 // pred_fallthru
      _
    // Predicated region
    $region22: #{tpu_custom_call.1} parent=1 // pred_check
      _
    $region23: #{tpu_custom_call.1} parent=1 // pred_check_branch
      %137 = sbr.rel (0) target = $region25
    $region24: #{tpu_custom_call.1} parent=1 // pred_region
      %138 = dma.done [#allocation4], 32
    $region25: #{tpu_custom_call.1} parent=1 // pred_fallthru
      _
    %139 = vsyncpa [#allocation3], 1
    %140 = vsyncpa [#allocation6], 1
    %141 = vsyncpa [#allocation4], 1

</llo_original>
